<compile_context>
chip_gen: v6e
topology: v6e:2x2x1
jax: 0.10.0
libtpu: 0.0.40
codegen_flags: <defaults>
</compile_context>

<pallas_src>
import functools

import jax
import jax.numpy as jnp
from jax.experimental import pallas as pl
from jax.experimental.pallas import tpu as pltpu


def _skip_linear_kernel(x_ref, w_ref, b_ref, o_ref):
    # x_ref : (TM, Hp)  row tile of the flattened input
    # w_ref : (Hp, Hp)  linear weight (x @ W layout), VMEM-resident
    # b_ref : (1, Hp)   linear bias, VMEM-resident
    # o_ref : (TM, Hp)  output tile = x + x @ W + b
    x = x_ref[...]
    y = jnp.dot(x, w_ref[...], preferred_element_type=jnp.float32)
    o_ref[...] = (
        x.astype(jnp.float32) + y + b_ref[...].astype(jnp.float32)
    ).astype(o_ref.dtype)


def _round_up(v, m):
    return ((v + m - 1) // m) * m


@functools.partial(jax.jit, static_argnames=("tm",))
def skip_connection_forward(x, w, b, mask=None, *, tm=512):
    """SkipConnection(Linear(H, H)) forward: x + (x @ w + b).

    x: (B, N, H)  activations (batch, nodes, hidden)
    w: (H, H)     weight such that module(x) = x @ w + b (torch weight.T)
    b: (H,)       bias
    mask: ignored by this wrapped (feed-forward) module; kept for API parity.
    """
    B, N, H = x.shape
    R = B * N

    # Lane-dense hidden dim (multiple of 128) and sublane-aligned row tile.
    Hp = max(128, _round_up(H, 128))
    TM = min(tm, _round_up(R, 8))
    Rp = _round_up(R, TM)

    x2d = x.reshape(R, H)
    x2d_p = jnp.pad(x2d, ((0, Rp - R), (0, Hp - H)))
    w_p = jnp.pad(w, ((0, Hp - H), (0, Hp - H)))
    b2d_p = jnp.pad(b, (0, Hp - H)).reshape(1, Hp)

    grid = (Rp // TM,)
    dtype_bytes = jnp.dtype(x.dtype).itemsize

    # VMEM budget: 2 x/out double buffers + resident W/bias (+ headroom).
    vmem_bytes = 4 * TM * Hp * dtype_bytes + Hp * Hp * 4 + Hp * 4 + (2 << 20)
    vmem_limit = min(max(vmem_bytes, 32 * 1024 * 1024), 100 * 1024 * 1024)

    out2d_p = pl.pallas_call(
        _skip_linear_kernel,
        out_shape=jax.ShapeDtypeStruct((Rp, Hp), x.dtype),
        grid_spec=pltpu.PrefetchScalarGridSpec(
            num_scalar_prefetch=0,
            grid=grid,
            in_specs=[
                pl.BlockSpec((TM, Hp), lambda i: (i, 0)),   # x row tile
                pl.BlockSpec((Hp, Hp), lambda i: (0, 0)),   # W resident
                pl.BlockSpec((1, Hp), lambda i: (0, 0)),    # bias resident
            ],
            out_specs=pl.BlockSpec((TM, Hp), lambda i: (i, 0)),
        ),
        compiler_params=pltpu.CompilerParams(
            dimension_semantics=("parallel",),
            vmem_limit_bytes=vmem_limit,
        ),
        input_output_aliases={0: 0},  # reuse the padded x slab as output
        cost_estimate=pl.CostEstimate(
            flops=2 * Rp * Hp * Hp,
            bytes_accessed=(2 * Rp * Hp) * dtype_bytes + Hp * Hp * 4 + Hp * 4,
            transcendentals=0,
        ),
    )(x2d_p, w_p, b2d_p)

    return out2d_p[:R, :H].reshape(B, N, H)


if __name__ == "__main__":
    key = jax.random.PRNGKey(0)
    k_x, k_w, k_b = jax.random.split(key, 3)

    B, N, H = 2, 8, 32  # batch, nodes (graph sequence), hidden

    x = jax.random.normal(k_x, (B, N, H), dtype=jnp.float32)
    # Deterministic Linear(H, H) params (PyTorch-style uniform(-1/sqrt(H), 1/sqrt(H)))
    bound = 1.0 / (H ** 0.5)
    w = jax.random.uniform(k_w, (H, H), minval=-bound, maxval=bound, dtype=jnp.float32)
    b = jax.random.uniform(k_b, (H,), minval=-bound, maxval=bound, dtype=jnp.float32)

    out = skip_connection_forward(x, w, b, mask=None)
    jax.block_until_ready(out)

    # Reference check (plain JAX) for the fused residual path.
    ref = x + (x @ w + b)
    assert out.shape == ref.shape
    assert jnp.allclose(out, ref, atol=1e-5, rtol=1e-5), "mismatch vs reference"

    # TODO(synk): the wrapped `module` is arbitrary in PyTorch (e.g. multi-head
    # attention); only the Linear/feed-forward instantiation is fused here.
    print("KERNEL_OK")
</pallas_src>

<mosaic_0001>
module attributes {stable_mosaic.version = 11 : i64} {
  func.func @_skip_linear_kernel(%arg0: i32, %arg1: memref<16x128xf32, #tpu.memory_space<vmem>>, %arg2: memref<128x128xf32, #tpu.memory_space<vmem>>, %arg3: memref<1x128xf32, #tpu.memory_space<vmem>>, %arg4: memref<16x128xf32, #tpu.memory_space<vmem>>) attributes {dimension_semantics = [#tpu.dimension_semantics<parallel>], iteration_bounds = array<i64: 1>, scalar_prefetch = 0 : i64, scratch_operands = 0 : i64, tpu.core_type = #tpu.core_type<tc>, window_params = [{transform_indices = @transform_0, window_bounds = array<i64: 16, 128>}, {pipeline_mode = #tpu.pipeline_mode<synchronous>, transform_indices = @transform_1, window_bounds = array<i64: 128, 128>}, {pipeline_mode = #tpu.pipeline_mode<synchronous>, transform_indices = @transform_2, window_bounds = array<i64: 1, 128>}, {transform_indices = @transform_3, window_bounds = array<i64: 16, 128>}]} {
    %c0 = arith.constant 0 : index
    %c0_0 = arith.constant 0 : index
    %0 = vector.load %arg1[%c0, %c0_0] : memref<16x128xf32, #tpu.memory_space<vmem>>, vector<16x128xf32>
    %c0_1 = arith.constant 0 : index
    %c0_2 = arith.constant 0 : index
    %1 = vector.load %arg2[%c0_1, %c0_2] : memref<128x128xf32, #tpu.memory_space<vmem>>, vector<128x128xf32>
    %cst = arith.constant dense<0.000000e+00> : vector<16x128xf32>
    %2 = tpu.matmul %0, %1, %cst {dimension_numbers = #tpu.dot_dimension_numbers<[1], [0], [0], [1], [0, 0, 1, 1], [], []>} : vector<16x128xf32>, vector<128x128xf32>, vector<16x128xf32> -> vector<16x128xf32>
    %3 = arith.addf %0, %2 : vector<16x128xf32>
    %c0_3 = arith.constant 0 : index
    %c0_4 = arith.constant 0 : index
    %4 = vector.load %arg3[%c0_3, %c0_4] : memref<1x128xf32, #tpu.memory_space<vmem>>, vector<1x128xf32>
    %5 = vector.broadcast %4 : vector<1x128xf32> to vector<16x128xf32>
    %6 = arith.addf %3, %5 : vector<16x128xf32>
    %c0_5 = arith.constant 0 : index
    %c0_6 = arith.constant 0 : index
    %7 = vector.load %arg4[%c0_5, %c0_6] : memref<16x128xf32, #tpu.memory_space<vmem>>, vector<16x128xf32>
    tpu.vector_store %arg4[%c0_5, %c0_6], %6 {strides = array<i32>} : memref<16x128xf32, #tpu.memory_space<vmem>>, vector<16x128xf32>,
    return
  }
  func.func @transform_0(%arg0: i32) -> (i32, i32) {
    %c0_i32 = arith.constant 0 : i32
    %c0_i32_0 = arith.constant 0 : i32
    return %arg0, %c0_i32 : i32, i32
  }
  func.func @transform_1(%arg0: i32) -> (i32, i32) {
    %c0_i32 = arith.constant 0 : i32
    %c0_i32_0 = arith.constant 0 : i32
    %c0_i32_1 = arith.constant 0 : i32
    return %c0_i32, %c0_i32_0 : i32, i32
  }
  func.func @transform_2(%arg0: i32) -> (i32, i32) {
    %c0_i32 = arith.constant 0 : i32
    %c0_i32_0 = arith.constant 0 : i32
    %c0_i32_1 = arith.constant 0 : i32
    return %c0_i32, %c0_i32_0 : i32, i32
  }
  func.func @transform_3(%arg0: i32) -> (i32, i32) {
    %c0_i32 = arith.constant 0 : i32
    %c0_i32_0 = arith.constant 0 : i32
    return %arg0, %c0_i32 : i32, i32
  }
}

</mosaic_0001>

<llo_original>
// kernel: skip_connection_forward.1
$region0: #{skip_connection_forward.1}
  #allocation0 [shape = 'u32[]', space=smem, size = 0x4, offset = 0x4, fixed_abs, tag = 'smem constant byte address 0x4 - core index']
  #allocation1 [shape = 'u32[144,128]{1,0:T(1,128)}', space=vmem, size = 0x12000, scoped, tag = 'internal scratch']
  %s0 = inlined_call_operand.vmem [shape: f32[16,128], index: 0, kind: input, shape index: {}, may-alias: {0,3}]
  %s1 = inlined_call_operand.vmem [shape: f32[128,128], index: 1, kind: input, shape index: {}]
  %s2 = inlined_call_operand.vmem [shape: f32[1,128], index: 2, kind: input, shape index: {}]
  %s3 = inlined_call_operand.vmem [shape: f32[16,128], index: 3, kind: output, shape index: {}, may-alias: {0,3}]
  %s4 = sld [smem:[#allocation0]]
  $region22: #{skip_connection_forward.1} parent=0
    _
  %s6 = ssub.s32 1, %s4
  %s7 = scalar_select 0, %s6, %s4
  // Predicated region
  $region2: #{skip_connection_forward.1} parent=0 // pred_check
    _
  $region3: #{skip_connection_forward.1} parent=0 // pred_check_branch
    %9 = sbr.rel (0) target = $region5
  $region4: #{skip_connection_forward.1} parent=0 // pred_region
    _
  $region5: #{skip_connection_forward.1} parent=0 // pred_fallthru
    _
  // Predicated region
  $region6: #{skip_connection_forward.1} parent=0 // pred_check
    _
  $region7: #{skip_connection_forward.1} parent=0 // pred_check_branch
    %11 = sbr.rel (0) target = $region9
  $region8: #{skip_connection_forward.1} parent=0 // pred_region
    _
  $region9: #{skip_connection_forward.1} parent=0 // pred_fallthru
    _
  // Predicated region
  $region10: #{skip_connection_forward.1} parent=0 // pred_check
    _
  $region11: #{skip_connection_forward.1} parent=0 // pred_check_branch
    %13 = sbr.rel (0) target = $region13
  $region12: #{skip_connection_forward.1} parent=0 // pred_region
    _
  $region13: #{skip_connection_forward.1} parent=0 // pred_fallthru
    _
  %v14 = vld [vmem:[%s0] sm:$0xff]
  %v15 = vld [vmem:[%s0 + $0x8] sm:$0xff]
  %v16 = vld [vmem:[%s1] sm:$0xff]
  %v17 = vld [vmem:[%s1 + $0x8] sm:$0xff]
  %v18 = vld [vmem:[%s1 + $0x10] sm:$0xff]
  %v19 = vld [vmem:[%s1 + $0x18] sm:$0xff]
  %v20 = vld [vmem:[%s1 + $0x20] sm:$0xff]
  %v21 = vld [vmem:[%s1 + $0x28] sm:$0xff]
  %v22 = vld [vmem:[%s1 + $0x30] sm:$0xff]
  %v23 = vld [vmem:[%s1 + $0x38] sm:$0xff]
  %v24 = vld [vmem:[%s1 + $0x40] sm:$0xff]
  %v25 = vld [vmem:[%s1 + $0x48] sm:$0xff]
  %v26 = vld [vmem:[%s1 + $0x50] sm:$0xff]
  %v27 = vld [vmem:[%s1 + $0x58] sm:$0xff]
  %v28 = vld [vmem:[%s1 + $0x60] sm:$0xff]
  %v29 = vld [vmem:[%s1 + $0x68] sm:$0xff]
  %v30 = vld [vmem:[%s1 + $0x70] sm:$0xff]
  %v31 = vld [vmem:[%s1 + $0x78] sm:$0xff]
  %32 = vmatprep.subr.mxu0 0.0
  %33 = vmatpush1.msra.mxu0 %v31
  %34 = vmatprep.subr.mxu0 0.0
  %35 = vmatpush1.msra.mxu0 %v30
  %36 = vmatprep.subr.mxu0 0.0
  %37 = vmatpush1.msra.mxu0 %v29
  %38 = vmatprep.subr.mxu0 0.0
  %39 = vmatpush1.msra.mxu0 %v28
  %40 = vmatprep.subr.mxu0 0.0
  %41 = vmatpush1.msra.mxu0 %v27
  %42 = vmatprep.subr.mxu0 0.0
  %43 = vmatpush1.msra.mxu0 %v26
  %44 = vmatprep.subr.mxu0 0.0
  %45 = vmatpush1.msra.mxu0 %v25
  %46 = vmatprep.subr.mxu0 0.0
  %47 = vmatpush1.msra.mxu0 %v24
  %48 = vmatprep.subr.mxu0 0.0
  %49 = vmatpush1.msra.mxu0 %v23
  %50 = vmatprep.subr.mxu0 0.0
  %51 = vmatpush1.msra.mxu0 %v22
  %52 = vmatprep.subr.mxu0 0.0
  %53 = vmatpush1.msra.mxu0 %v21
  %54 = vmatprep.subr.mxu0 0.0
  %55 = vmatpush1.msra.mxu0 %v20
  %56 = vmatprep.subr.mxu0 0.0
  %57 = vmatpush1.msra.mxu0 %v19
  %58 = vmatprep.subr.mxu0 0.0
  %59 = vmatpush1.msra.mxu0 %v18
  %60 = vmatprep.subr.mxu0 0.0
  %61 = vmatpush1.msra.mxu0 %v17
  %62 = vmatprep.subr.mxu0 0.0
  %63 = vmatpush1.msra.mxu0 %v16
  %64 = vmatprep.subr.mxu0 0.0
  %65 = vmatpush2.msra.mxu0 0.0
  %66 = vmatprep.subr.mxu0 0.0
  %67 = vmatpush2.msra.mxu0 0.0
  %68 = vmatprep.subr.mxu0 0.0
  %69 = vmatpush2.msra.mxu0 0.0
  %70 = vmatprep.subr.mxu0 0.0
  %71 = vmatpush2.msra.mxu0 0.0
  %72 = vmatprep.subr.mxu0 0.0
  %73 = vmatpush2.msra.mxu0 0.0
  %74 = vmatprep.subr.mxu0 0.0
  %75 = vmatpush2.msra.mxu0 0.0
  %76 = vmatprep.subr.mxu0 0.0
  %77 = vmatpush2.msra.mxu0 0.0
  %78 = vmatprep.subr.mxu0 0.0
  %79 = vmatpush2.msra.mxu0 0.0
  %80 = vmatprep.subr.mxu0 0.0
  %81 = vmatpush2.msra.mxu0 0.0
  %82 = vmatprep.subr.mxu0 0.0
  %83 = vmatpush2.msra.mxu0 0.0
  %84 = vmatprep.subr.mxu0 0.0
  %85 = vmatpush2.msra.mxu0 0.0
  %86 = vmatprep.subr.mxu0 0.0
  %87 = vmatpush2.msra.mxu0 0.0
  %88 = vmatprep.subr.mxu0 0.0
  %89 = vmatpush2.msra.mxu0 0.0
  %90 = vmatprep.subr.mxu0 0.0
  %91 = vmatpush2.msra.mxu0 0.0
  %92 = vmatprep.subr.mxu0 0.0
  %93 = vmatpush2.msra.mxu0 0.0
  %94 = vmatprep.subr.mxu0 0.0
  %95 = vmatpush2.msra.mxu0 0.0
  %96 = vmatprep.mubr.f32.mxu0 0.0
  %97 = vmatmul.mubr.f32.gmra.mxu0 %v14
  %v98 = vpop.f32.mrf.mxu0
  %v99 = vadd.f32 0.0, %v98
  %v100 = vpop.f32.mrf.mxu0
  %101 = vmatprep.mubr.f32.mxu0 0.0
  %102 = vmatmul.mubr.f32.gmra.mxu0 %v15
  %v103 = vpop.f32.mrf.mxu0
  %v104 = vadd.f32 0.0, %v103
  %v105 = vpop.f32.mrf.mxu0
  %106 = vdwg.mxu0
  %v107 = vadd.f32 %v14, %v99
  %v108 = vadd.f32 %v15, %v104
  %v109 = vld [vmem:[%s2] sm:$0x1]
  %v111 = vlaneseq
  %v112 = vshrl.u32 %v111, 7
  %v113 = vsub.s32 0, %v112
  %v114 = vrot.slane %v109, %v113
  %v116 = vadd.f32 %v107, %v114
  %v117 = vadd.f32 %v108, %v114
  %118 = vst [vmem:[%s3] sm:$0xff] %v116
  %119 = vst [vmem:[%s3 + $0x8] sm:$0xff] %v117
  // Predicated region
  $region14: #{skip_connection_forward.1} parent=0 // pred_check
    _
  $region15: #{skip_connection_forward.1} parent=0 // pred_check_branch
    %121 = sbr.rel (0) target = $region17
  $region16: #{skip_connection_forward.1} parent=0 // pred_region
    _
  $region17: #{skip_connection_forward.1} parent=0 // pred_fallthru
    _
  // Predicated region
  $region18: #{skip_connection_forward.1} parent=0 // pred_check
    _
  $region19: #{skip_connection_forward.1} parent=0 // pred_check_branch
    %123 = sbr.rel (0) target = $region21
  $region20: #{skip_connection_forward.1} parent=0 // pred_region
    _
  $region21: #{skip_connection_forward.1} parent=0 // pred_fallthru
    _

</llo_original>
